<compile_context>
chip_gen: v7x
topology: tpu7x:2x2x1
jax: 0.10.0
libtpu: 0.0.40
codegen_flags: <defaults>
</compile_context>

<pallas_src>
import math

import jax
import jax.numpy as jnp
from jax import lax
from jax.experimental import pallas as pl
from jax.experimental.pallas import tpu as pltpu


# ---------------------------------------------------------------------------
# Kernels
# ---------------------------------------------------------------------------
def _select_sin_cos(angle, out_dtype):
    # Lane parity == original-column parity because d_model is even.
    col = lax.broadcasted_iota(jnp.int32, angle.shape, 1)
    even = (col & 1) == 0
    return jnp.where(even, jnp.sin(angle), jnp.cos(angle)).astype(out_dtype)


def _pe_kernel_with_pos(pos_ref, rate_ref, o_ref):
    # pos_ref:  (RB, 1) or (RB, G)   position values (pre-expanded when packed)
    # rate_ref: (1, G)               div_term[(c % d_model)//2]
    # o_ref:    (RB, G)              lane-dense output block
    angle = pos_ref[...] * rate_ref[...]
    o_ref[...] = _select_sin_cos(angle, o_ref.dtype)


def _make_pe_kernel_iota(g, row_block):
    # positional_feat=None: positions are generated in-kernel, no position DMA.
    def kernel(rate_ref, toff_ref, o_ref):
        shape = o_ref.shape                                  # (RB, G)
        base = (pl.program_id(0) * (row_block * g)).astype(jnp.float32)
        r = lax.broadcasted_iota(jnp.int32, shape, 0).astype(jnp.float32)
        pos = base + r * float(g) + toff_ref[...]            # t = row*g + c//d_model
        angle = pos * rate_ref[...]
        o_ref[...] = _select_sin_cos(angle, o_ref.dtype)
    return kernel


# ---------------------------------------------------------------------------
# Tiling helpers
# ---------------------------------------------------------------------------
def _choose_packing(time_steps, d_model):
    """Number of time steps folded into one lane-dense super-row."""
    if d_model % 128 == 0:
        return 1
    g0 = (d_model * 128) // math.gcd(d_model, 128) // d_model   # lcm/d_model
    if time_steps % g0 != 0:
        return 1   # fall back to lane-sparse stores (still correct)
    g = g0
    while g * d_model < 512 and time_steps % (g * 2) == 0:
        g *= 2
    return g


def _choose_row_block(rows_total, lane_width):
    """Rows per block: ~2 MiB cap (v5e scoped-VMEM safe), >=2 grid steps when possible."""
    bytes_per_row = lane_width * 4
    max_rows_vmem = max(8, (2 * 1024 * 1024) // bytes_per_row)
    row_block = min(512, max_rows_vmem)
    if rows_total >= 16:
        half = (((rows_total + 1) // 2) + 7) // 8 * 8   # aim for >=2 steps (v7x dual-TC)
        row_block = min(row_block, half)
    row_block = (row_block // 8) * 8
    if row_block <= 0 or row_block >= rows_total:
        return rows_total
    return row_block


# ---------------------------------------------------------------------------
# Wrapper
# ---------------------------------------------------------------------------
def positional_encoder_pallas(time_steps, d_model, positional_feat=None,
                              x_cov=None, out_dtype=jnp.float32):
    # TODO(synk): PyTorch's odd-d_model branch is shape-inconsistent in the
    # original module (pe[:,1::2] vs cos(...) widths differ); only even d_model
    # is supported here, matching the module's usable configurations.
    assert d_model % 2 == 0, "only even d_model is supported"
    T = time_steps

    # ---- packing: g time steps per lane-dense super-row of width G ----
    g = _choose_packing(T, d_model)
    G = g * d_model
    rows_total = T // g

    # ---- invariant per-lane tables (hoisted out of the kernel) ----
    col = jnp.arange(G, dtype=jnp.int32)
    j = col % d_model
    half = jnp.arange(0, d_model, 2, dtype=jnp.float32)
    div_term = jnp.exp(half * (-jnp.log(jnp.float32(10000.0)) / d_model))
    rate = div_term[j // 2][None, :].astype(jnp.float32)            # (1, G)

    # ---- tiling ----
    row_block = _choose_row_block(rows_total, G)
    grid = (pl.cdiv(rows_total, row_block),)
    lane_spec = pl.BlockSpec((1, G), lambda i: (0, 0))
    out_specs = pl.BlockSpec((row_block, G), lambda i: (i, 0))
    out_shape = jax.ShapeDtypeStruct((rows_total, G), out_dtype)
    compiler_params = pltpu.CompilerParams(dimension_semantics=("parallel",))

    if positional_feat is not None:
        assert x_cov is not None
        position = x_cov[0, :, positional_feat].astype(jnp.float32)  # (L,)
        assert position.shape[0] == T, "x_cov sequence length must equal time_steps"
        if g == 1:
            pos = position[:, None]                                  # (T, 1)
            pos_spec = pl.BlockSpec((row_block, 1), lambda i: (i, 0))
        else:
            # pre-expanded so the kernel is a pure broadcast FMA + sin/cos select
            pos = jnp.repeat(position.reshape(rows_total, g), d_model, axis=1)  # (rows, G)
            pos_spec = pl.BlockSpec((row_block, G), lambda i: (i, 0))
        packed = pl.pallas_call(
            _pe_kernel_with_pos,
            out_shape=out_shape,
            grid=grid,
            in_specs=[pos_spec, lane_spec],
            out_specs=out_specs,
            compiler_params=compiler_params,
        )(pos, rate)
    else:
        toff = (col // d_model).astype(jnp.float32)[None, :]          # (1, G)
        packed = pl.pallas_call(
            _make_pe_kernel_iota(g, row_block),
            out_shape=out_shape,
            grid=grid,
            in_specs=[lane_spec, lane_spec],
            out_specs=out_specs,
            compiler_params=compiler_params,
        )(rate, toff)

    return packed.reshape(T, d_model)


# ---------------------------------------------------------------------------
# Pure-JAX reference mirroring the PyTorch forward (even d_model)
# ---------------------------------------------------------------------------
def positional_encoder_ref(time_steps, d_model, positional_feat=None, x_cov=None):
    if positional_feat is not None:
        assert x_cov is not None
        position = x_cov[0, :, positional_feat].astype(jnp.float32)[:, None]
    else:
        position = jnp.arange(time_steps, dtype=jnp.float32)[:, None]
    div_term = jnp.exp(jnp.arange(0, d_model, 2, dtype=jnp.float32)
                       * (-jnp.log(jnp.float32(10000.0)) / d_model))
    pe = jnp.zeros((time_steps, d_model), dtype=jnp.float32)
    pe = pe.at[:, 0::2].set(jnp.sin(position * div_term))
    pe = pe.at[:, 1::2].set(jnp.cos(position * div_term))
    return pe


# ---------------------------------------------------------------------------
# Main
# ---------------------------------------------------------------------------
if __name__ == "__main__":
    B, L, N = 2, 16, 4          # x_cov: (batch, seq, covariate features)
    time_steps, d_model = L, 32
    positional_feat = 1

    key = jax.random.PRNGKey(0)
    x_cov = jax.random.normal(key, (B, L, N), dtype=jnp.float32) * 2.0

    # Path 1: positions taken from a covariate feature of x_cov
    pe = jax.block_until_ready(
        positional_encoder_pallas(time_steps, d_model,
                                  positional_feat=positional_feat, x_cov=x_cov))
    ref = positional_encoder_ref(time_steps, d_model,
                                 positional_feat=positional_feat, x_cov=x_cov)
    assert pe.shape == (time_steps, d_model)
    assert jnp.allclose(pe, ref, rtol=1e-5, atol=1e-5), (
        f"max abs err {float(jnp.max(jnp.abs(pe - ref)))}")

    # Path 2: positional_feat=None -> positions generated in-kernel via iota
    pe2 = jax.block_until_ready(positional_encoder_pallas(time_steps, d_model))
    ref2 = positional_encoder_ref(time_steps, d_model)
    assert jnp.allclose(pe2, ref2, rtol=1e-5, atol=1e-5), (
        f"max abs err {float(jnp.max(jnp.abs(pe2 - ref2)))}")

    # Path 3: bf16 output (kernel is HBM-write-bound; compute stays f32, cast at store)
    pe3 = jax.block_until_ready(
        positional_encoder_pallas(time_steps, d_model,
                                  positional_feat=positional_feat, x_cov=x_cov,
                                  out_dtype=jnp.bfloat16))
    assert pe3.dtype == jnp.bfloat16
    assert jnp.allclose(pe3.astype(jnp.float32), ref, atol=2e-2), (
        f"max abs err {float(jnp.max(jnp.abs(pe3.astype(jnp.float32) - ref)))}")

    print("KERNEL_OK")
</pallas_src>

<mosaic_0001>
module attributes {stable_mosaic.version = 11 : i64} {
  func.func @_pe_kernel_with_pos(%arg0: i32, %arg1: memref<1x512xf32, #tpu.memory_space<vmem>>, %arg2: memref<1x512xf32, #tpu.memory_space<vmem>>, %arg3: memref<1x512xf32, #tpu.memory_space<vmem>>) attributes {dimension_semantics = [#tpu.dimension_semantics<parallel>], iteration_bounds = array<i64: 1>, scalar_prefetch = 0 : i64, scratch_operands = 0 : i64, tpu.core_type = #tpu.core_type<tc>, window_params = [{transform_indices = @transform_0, window_bounds = array<i64: 1, 512>}, {pipeline_mode = #tpu.pipeline_mode<synchronous>, transform_indices = @transform_1, window_bounds = array<i64: 1, 512>}, {transform_indices = @transform_2, window_bounds = array<i64: 1, 512>}]} {
    %c0 = arith.constant 0 : index
    %c0_0 = arith.constant 0 : index
    %0 = vector.load %arg1[%c0, %c0_0] : memref<1x512xf32, #tpu.memory_space<vmem>>, vector<1x512xf32>
    %c0_1 = arith.constant 0 : index
    %c0_2 = arith.constant 0 : index
    %1 = vector.load %arg2[%c0_1, %c0_2] : memref<1x512xf32, #tpu.memory_space<vmem>>, vector<1x512xf32>
    %2 = arith.mulf %0, %1 : vector<1x512xf32>
    %3 = tpu.iota {dimensions = array<i32: 1>} : vector<1x512xi32>
    %c1_i32 = arith.constant 1 : i32
    %4 = vector.broadcast %c1_i32 : i32 to vector<1x512xi32>
    %5 = arith.andi %3, %4 : vector<1x512xi32>
    %c0_i32 = arith.constant 0 : i32
    %6 = vector.broadcast %c0_i32 : i32 to vector<1x512xi32>
    %7 = arith.cmpi eq, %5, %6 : vector<1x512xi32>
    %8 = math.sin %2 : vector<1x512xf32>
    %9 = math.cos %2 : vector<1x512xf32>
    %10 = arith.select %7, %8, %9 : vector<1x512xi1>, vector<1x512xf32>
    %c0_3 = arith.constant 0 : index
    %c0_4 = arith.constant 0 : index
    %11 = vector.load %arg3[%c0_3, %c0_4] : memref<1x512xf32, #tpu.memory_space<vmem>>, vector<1x512xf32>
    tpu.vector_store %arg3[%c0_3, %c0_4], %10 {strides = array<i32>} : memref<1x512xf32, #tpu.memory_space<vmem>>, vector<1x512xf32>,
    return
  }
  func.func @transform_0(%arg0: i32) -> (i32, i32) {
    %c0_i32 = arith.constant 0 : i32
    %c0_i32_0 = arith.constant 0 : i32
    return %arg0, %c0_i32 : i32, i32
  }
  func.func @transform_1(%arg0: i32) -> (i32, i32) {
    %c0_i32 = arith.constant 0 : i32
    %c0_i32_0 = arith.constant 0 : i32
    %c0_i32_1 = arith.constant 0 : i32
    return %c0_i32, %c0_i32_0 : i32, i32
  }
  func.func @transform_2(%arg0: i32) -> (i32, i32) {
    %c0_i32 = arith.constant 0 : i32
    %c0_i32_0 = arith.constant 0 : i32
    return %arg0, %c0_i32 : i32, i32
  }
}

</mosaic_0001>

<llo_original>
// kernel: tpu_custom_call.1
$region0: #{tpu_custom_call.1}
  #allocation0 [shape = 'u32[]', space=smem, size = 0x4, offset = 0x4, fixed_abs, tag = 'smem constant byte address 0x4 - core index']
  #allocation1 [shape = 'u32[144,128]{1,0:T(1,128)}', space=vmem, size = 0x12000, scoped, tag = 'internal scratch']
  %s0 = inlined_call_operand.hbm [shape: f32[1,512], index: 0, kind: input, shape index: {}]
  %s1 = inlined_call_operand.hbm [shape: f32[1,512], index: 1, kind: input, shape index: {}]
  %s2 = inlined_call_operand.hbm [shape: f32[1,512], index: 2, kind: output, shape index: {}]
  %s3 = sld [smem:[#allocation0]]
  $region26: #{tpu_custom_call.1} parent=0
    _
  %s5 = ssub.s32 1, %s3
  %s6 = scalar_select 0, %s5, %s3
  $region1: #{tpu_custom_call.1} parent=0
    #allocation2 [shape = 'u8[2048]{0}', space=vmem, size = 0x800, scoped, tag = 'input window, operand 0, single buffered']
    #allocation3 [shape = 's32[1]{0}', space=sflag, size = 0x4, scoped, tag = 'scoped memory for tpu_custom_call.1']
    #allocation4 [shape = 's32[1]{0}', space=sflag, size = 0x4, scoped, tag = 'scoped memory for tpu_custom_call.1']
    #allocation5 [shape = 'u8[2048]{0}', space=vmem, size = 0x800, scoped, tag = 'input window, operand 1, single buffered']
    #allocation6 [shape = 's32[1]{0}', space=sflag, size = 0x4, scoped, tag = 'scoped memory for tpu_custom_call.1']
    #allocation7 [shape = 'u8[2048]{0}', space=vmem, size = 0x800, scoped, tag = 'output window, operand 0, single buffered']
    %7 = vsyncpa [#allocation3], 0
    %8 = vsyncpa [#allocation6], 0
    %9 = vsyncpa [#allocation4], 0
    // Predicated region
    $region2: #{tpu_custom_call.1} parent=1 // pred_check
      _
    $region3: #{tpu_custom_call.1} parent=1 // pred_check_branch
      %11 = sbr.rel (0) target = $region5
    $region4: #{tpu_custom_call.1} parent=1 // pred_region
      %s13 = ssub.s32 64, 64
      %14 = vsyncadd [#allocation3], %s13
      %s16 = sshll.u32 [#allocation2], 4
      %s17 = int_to_ptr.vmem [resolvable:$true] %s16
      %19 = dma.hbm_to_vmem [thread:$0]  %s0, 64, %s17, [#allocation3]
    $region5: #{tpu_custom_call.1} parent=1 // pred_fallthru
      _
    // Predicated region
    $region6: #{tpu_custom_call.1} parent=1 // pred_check
      _
    $region7: #{tpu_custom_call.1} parent=1 // pred_check_branch
      %21 = sbr.rel (0) target = $region9
    $region8: #{tpu_custom_call.1} parent=1 // pred_region
      %s23 = ssub.s32 64, 64
      %24 = vsyncadd [#allocation6], %s23
      %s26 = sshll.u32 [#allocation5], 4
      %s27 = int_to_ptr.vmem [resolvable:$true] %s26
      %29 = dma.hbm_to_vmem [thread:$0]  %s1, 64, %s27, [#allocation6]
    $region9: #{tpu_custom_call.1} parent=1 // pred_fallthru
      _
    // Predicated region
    $region10: #{tpu_custom_call.1} parent=1 // pred_check
      _
    $region11: #{tpu_custom_call.1} parent=1 // pred_check_branch
      %31 = sbr.rel (0) target = $region13
    $region12: #{tpu_custom_call.1} parent=1 // pred_region
      %32 = dma.done [#allocation3], 64
    $region13: #{tpu_custom_call.1} parent=1 // pred_fallthru
      _
    // Predicated region
    $region14: #{tpu_custom_call.1} parent=1 // pred_check
      _
    $region15: #{tpu_custom_call.1} parent=1 // pred_check_branch
      %34 = sbr.rel (0) target = $region17
    $region16: #{tpu_custom_call.1} parent=1 // pred_region
      %35 = dma.done [#allocation6], 64
    $region17: #{tpu_custom_call.1} parent=1 // pred_fallthru
      _
    %v36 = vld [vmem:[#allocation2] sm:$0xf]
    %v37 = vld [vmem:[#allocation5] sm:$0xf]
    %v38 = vmul.f32 %v36, %v37
    %v39 = vlaneseq
    %v40 = vand.u32 %v39, 127
    %v41 = vadd.s32 %v40, 128
    %v42 = vadd.s32 %v40, 256
    %v43 = vadd.s32 %v40, 384
    %v44 = vand.u32 %v40, 1
    %v45 = vand.u32 %v41, 1
    %v46 = vand.u32 %v42, 1
    %v47 = vand.u32 %v43, 1
    %vm48 = vcmp.eq.s32.totalorder %v44, 0
    %vm49 = vcmp.eq.s32.totalorder %v45, 0
    %vm50 = vcmp.eq.s32.totalorder %v46, 0
    %vm51 = vcmp.eq.s32.totalorder %v47, 0
    %v52 = vand.u32 2147483647, %v38
    %vm53 = vcmp.le.f32.partialorder %v52, 0.7853982
    %vm54 = vcmp.lt.s32.totalorder %v38, 0
    %v55 = vand.u32 %v38, 2139095040
    %v56 = vshrl.u32 %v55, 23
    %v57 = vsub.s32 %v56, 127
    %v58 = vand.u32 2147483647, %v38
    %v59 = vand.u32 %v58, 8388607
    %v60 = vor.u32 %v59, 8388608
    %v61 = vsub.s32 0, %v60
    %v62 = vadd.s32 %v57, 1
    %vm63 = vcmp.gt.s32.totalorder %v62, 0
    %v64 = vsel %vm63, %v62, 0
    %v65 = vshrl.u32 %v64, 5
    %v66 = vand.u32 %v64, 31
    %v67 = vsub.s32 32, %v66
    %v68 = vshrl.u32 683565275, %v67
    %v69 = vshll.u32 683565275, %v66
    %v70 = vshrl.u32 2475754826, %v67
    %v71 = vor.u32 %v69, %v70
    %v72 = vshll.u32 2475754826, %v66
    %v73 = vshrl.u32 2131351028, %v67
    %v74 = vor.u32 %v72, %v73
    %v75 = vshll.u32 2131351028, %v66
    %v76 = vshrl.u32 2102212464, %v67
    %v77 = vor.u32 %v75, %v76
    %v78 = vshll.u32 2102212464, %v66
    %v79 = vshrl.u32 920167782, %v67
    %v80 = vor.u32 %v78, %v79
    %v81 = vshll.u32 920167782, %v66
    %v82 = vshrl.u32 1326507024, %v67
    %v83 = vor.u32 %v81, %v82
    %vm84 = vcmp.lt.s32.totalorder %v65, 1
    %vm85 = vcmp.lt.s32.totalorder %v65, 2
    %vm86 = vcmp.lt.s32.totalorder %v65, 3
    %vm87 = vcmp.lt.s32.totalorder %v65, 4
    %v88 = vsel %vm84, %v68, %v71
    %v89 = vsel %vm87, %v77, 2102212464
    %v90 = vsel %vm86, %v74, %v89
    %v91 = vsel %vm85, %v88, %v90
    %v92 = vsel %vm84, %v71, %v74
    %v93 = vsel %vm87, %v80, 920167782
    %v94 = vsel %vm86, %v77, %v93
    %v95 = vsel %vm85, %v92, %v94
    %v96 = vsel %vm84, %v74, %v77
    %v97 = vsel %vm87, %v83, 1326507024
    %v98 = vsel %vm86, %v80, %v97
    %v99 = vsel %vm85, %v96, %v98
    %v100 = vshll.u32 %v60, 8
    %v101 = vmul.u32.u64.compose %v100, %v99
    %v102 = vextract.low.u32 %v101
    %v103 = vextract.high.u32 %v101
    %v104 = vmul.u32.u64.compose %v100, %v95
    %v105 = vextract.low.u32 %v104
    %v106 = vextract.high.u32 %v104
    %v107 = vmul.u32 %v100, %v91
    %v108 = vadd.s32 %v103, %v105
    %vm109 = vc.u32 %v103, %v105
    %v110 = vadd.s32 %v106, 1
    %v111 = vsel %vm109, %v110, %v106
    %v112 = vadd.s32 %v107, %v111
    %v113 = vadd.s32 %v112, 536870912
    %v114 = vshrl.u32 %v113, 30
    %v115 = vshll.u32 %v114, 30
    %v116 = vsub.s32 %v112, %v115
    %vm117 = vcmp.lt.s32.totalorder %v116, 0
    %v118 = vsub.s32 0, %v116
    %v119 = vsel %vm117, %v118, %v116
    %v120 = vclz %v119
    %v121 = vsub.s32 %v120, 2
    %vm122 = vcmp.gt.s32.totalorder 0, %v121
    %v123 = vsel %vm122, 0, %v121
    %v124 = vsub.s32 32, %v123
    %v125 = vshll.u32 %v116, %v123
    %v126 = vshrl.u32 %v108, %v124
    %v127 = vor.u32 %v125, %v126
    %v128 = vsub.s32 4294967266, %v123
    %v129 = vadd.s32 %v128, 127
    %v130 = vshll.u32 %v129, 23
    %v131 = vor.u32 4788187, %v130
    %v132 = vand.u32 2147483647, %v131
    %v134 = vcvt.s32.f32 %v127
    %v135 = vmul.f32 %v134, %v132
    %v136 = vxor.u32 %v135, 2147483648
    %v137 = vsel %vm54, %v136, %v135
    %v138 = vsub.s32 4, %v114
    %v139 = vsel %vm54, %v138, %v114
    %v140 = vsel %vm53, %v38, %v137
    %v141 = vsel %vm53, 0, %v139
    %v142 = vcosq.f32.pop %v140
    %v143 = vsinq.f32.pop %v140
    %vm144 = vweird.f32 %v38
    %v145 = vadd.s32 %v141, 3
    %v146 = vand.u32 %v145, 3
    %vm147 = vcmp.lt.s32.totalorder %v146, 2
    %vm148 = vcmp.eq.s32.totalorder %v146, 0
    %v149 = vxor.u32 %v143, 2147483648
    %v150 = vsel %vm148, %v142, %v149
    %vm151 = vcmp.eq.s32.totalorder %v146, 2
    %v152 = vxor.u32 %v142, 2147483648
    %v153 = vsel %vm151, %v152, %v143
    %v154 = vsel %vm147, %v150, %v153
    %v155 = vsel %vm144, nan, %v154
    %v156 = vand.u32 2147483647, %v38
    %vm157 = vcmp.le.f32.partialorder %v156, 0.7853982
    %vm158 = vcmp.lt.s32.totalorder %v38, 0
    %v159 = vand.u32 %v38, 2139095040
    %v160 = vshrl.u32 %v159, 23
    %v161 = vsub.s32 %v160, 127
    %v162 = vand.u32 2147483647, %v38
    %v163 = vand.u32 %v162, 8388607
    %v164 = vor.u32 %v163, 8388608
    %v165 = vsub.s32 0, %v164
    %v166 = vadd.s32 %v161, 1
    %vm167 = vcmp.gt.s32.totalorder %v166, 0
    %v168 = vsel %vm167, %v166, 0
    %v169 = vshrl.u32 %v168, 5
    %v170 = vand.u32 %v168, 31
    %v171 = vsub.s32 32, %v170
    %v172 = vshrl.u32 683565275, %v171
    %v173 = vshll.u32 683565275, %v170
    %v174 = vshrl.u32 2475754826, %v171
    %v175 = vor.u32 %v173, %v174
    %v176 = vshll.u32 2475754826, %v170
    %v177 = vshrl.u32 2131351028, %v171
    %v178 = vor.u32 %v176, %v177
    %v179 = vshll.u32 2131351028, %v170
    %v180 = vshrl.u32 2102212464, %v171
    %v181 = vor.u32 %v179, %v180
    %v182 = vshll.u32 2102212464, %v170
    %v183 = vshrl.u32 920167782, %v171
    %v184 = vor.u32 %v182, %v183
    %v185 = vshll.u32 920167782, %v170
    %v186 = vshrl.u32 1326507024, %v171
    %v187 = vor.u32 %v185, %v186
    %vm188 = vcmp.lt.s32.totalorder %v169, 1
    %vm189 = vcmp.lt.s32.totalorder %v169, 2
    %vm190 = vcmp.lt.s32.totalorder %v169, 3
    %vm191 = vcmp.lt.s32.totalorder %v169, 4
    %v192 = vsel %vm188, %v172, %v175
    %v193 = vsel %vm191, %v181, 2102212464
    %v194 = vsel %vm190, %v178, %v193
    %v195 = vsel %vm189, %v192, %v194
    %v196 = vsel %vm188, %v175, %v178
    %v197 = vsel %vm191, %v184, 920167782
    %v198 = vsel %vm190, %v181, %v197
    %v199 = vsel %vm189, %v196, %v198
    %v200 = vsel %vm188, %v178, %v181
    %v201 = vsel %vm191, %v187, 1326507024
    %v202 = vsel %vm190, %v184, %v201
    %v203 = vsel %vm189, %v200, %v202
    %v204 = vshll.u32 %v164, 8
    %v205 = vmul.u32.u64.compose %v204, %v203
    %v206 = vextract.low.u32 %v205
    %v207 = vextract.high.u32 %v205
    %v208 = vmul.u32.u64.compose %v204, %v199
    %v209 = vextract.low.u32 %v208
    %v210 = vextract.high.u32 %v208
    %v211 = vmul.u32 %v204, %v195
    %v212 = vadd.s32 %v207, %v209
    %vm213 = vc.u32 %v207, %v209
    %v214 = vadd.s32 %v210, 1
    %v215 = vsel %vm213, %v214, %v210
    %v216 = vadd.s32 %v211, %v215
    %v217 = vadd.s32 %v216, 536870912
    %v218 = vshrl.u32 %v217, 30
    %v219 = vshll.u32 %v218, 30
    %v220 = vsub.s32 %v216, %v219
    %vm221 = vcmp.lt.s32.totalorder %v220, 0
    %v222 = vsub.s32 0, %v220
    %v223 = vsel %vm221, %v222, %v220
    %v224 = vclz %v223
    %v225 = vsub.s32 %v224, 2
    %vm226 = vcmp.gt.s32.totalorder 0, %v225
    %v227 = vsel %vm226, 0, %v225
    %v228 = vsub.s32 32, %v227
    %v229 = vshll.u32 %v220, %v227
    %v230 = vshrl.u32 %v212, %v228
    %v231 = vor.u32 %v229, %v230
    %v232 = vsub.s32 4294967266, %v227
    %v233 = vadd.s32 %v232, 127
    %v234 = vshll.u32 %v233, 23
    %v235 = vor.u32 4788187, %v234
    %v236 = vand.u32 2147483647, %v235
    %v238 = vcvt.s32.f32 %v231
    %v239 = vmul.f32 %v238, %v236
    %v240 = vxor.u32 %v239, 2147483648
    %v241 = vsel %vm158, %v240, %v239
    %v242 = vsub.s32 4, %v218
    %v243 = vsel %vm158, %v242, %v218
    %v244 = vsel %vm157, %v38, %v241
    %v245 = vsel %vm157, 0, %v243
    %v246 = vcosq.f32.pop %v244
    %v247 = vsinq.f32.pop %v244
    %vm248 = vweird.f32 %v38
    %v249 = vand.u32 %v245, 3
    %vm250 = vcmp.lt.s32.totalorder %v249, 2
    %vm251 = vcmp.eq.s32.totalorder %v249, 0
    %v252 = vxor.u32 %v247, 2147483648
    %v253 = vsel %vm251, %v246, %v252
    %vm254 = vcmp.eq.s32.totalorder %v249, 2
    %v255 = vxor.u32 %v246, 2147483648
    %v256 = vsel %vm254, %v255, %v247
    %v257 = vsel %vm250, %v253, %v256
    %v258 = vsel %vm248, nan, %v257
    %v260 = vlaneseq
    %v261 = vshrl.u32 %v260, 7
    %v262 = vsub.s32 0, %v261
    %v263 = vrot.slane %v155, %v262
    %v264 = vlaneseq
    %v265 = vshrl.u32 %v264, 7
    %v266 = vsub.s32 1, %v265
    %v267 = vrot.slane %v155, %v266
    %v268 = vlaneseq
    %v269 = vshrl.u32 %v268, 7
    %v270 = vsub.s32 2, %v269
    %v271 = vrot.slane %v155, %v270
    %v272 = vlaneseq
    %v273 = vshrl.u32 %v272, 7
    %v274 = vsub.s32 3, %v273
    %v275 = vrot.slane %v155, %v274
    %v281 = vlaneseq
    %v282 = vshrl.u32 %v281, 7
    %v283 = vsub.s32 0, %v282
    %v284 = vrot.slane %v258, %v283
    %v285 = vlaneseq
    %v286 = vshrl.u32 %v285, 7
    %v287 = vsub.s32 1, %v286
    %v288 = vrot.slane %v258, %v287
    %v289 = vlaneseq
    %v290 = vshrl.u32 %v289, 7
    %v291 = vsub.s32 2, %v290
    %v292 = vrot.slane %v258, %v291
    %v293 = vlaneseq
    %v294 = vshrl.u32 %v293, 7
    %v295 = vsub.s32 3, %v294
    %v296 = vrot.slane %v258, %v295
    %v301 = vsel %vm48, %v263, %v284
    %v302 = vsel %vm49, %v267, %v288
    %v303 = vsel %vm50, %v271, %v292
    %v304 = vsel %vm51, %v275, %v296
    %v309 = vcombine.low %v301, %v302
    %v310 = vcombine.low %v303, %v304
    %v312 = vunpack.c.l.s4 1966171168
    %v313 = vunpack.c.0.s8 %v312
    %v314 = vlaneseq
    %v315 = vshrl.u32 %v314, 7
    %v316 = vsub.s32 %v313, %v315
    %v317 = vrot.slane %v309, %v316
    %v319 = vunpack.c.l.s4 1966171168
    %v320 = vunpack.c.0.s8 %v319
    %v321 = vlaneseq
    %v322 = vshrl.u32 %v321, 7
    %v323 = vsub.s32 %v320, %v322
    %v324 = vrot.slane %v310, %v323
    %v325 = vcombine.low %v317, %v324
    %v327 = vunpack.c.l.s4 1966171168
    %v328 = vunpack.c.0.s8 %v327
    %v329 = vlaneseq
    %v330 = vshrl.u32 %v329, 7
    %v331 = vsub.s32 %v328, %v330
    %v332 = vrot.slane %v325, %v331
    %v334 = vlaneseq
    %vm335 = vcmp.ge.s32.totalorder %v334, 0
    %vm336 = vcmp.lt.s32.totalorder %v334, 512
    %vm337 = vmand %vm335, %vm336
    %338 = vst.msk [vmem:[#allocation7] sm:$0xf] %vm337, %v332
    // Predicated region
    $region18: #{tpu_custom_call.1} parent=1 // pred_check
      _
    $region19: #{tpu_custom_call.1} parent=1 // pred_check_branch
      %340 = sbr.rel (0) target = $region21
    $region20: #{tpu_custom_call.1} parent=1 // pred_region
      %s342 = ssub.s32 64, 64
      %343 = vsyncadd [#allocation4], %s342
      %s345 = sshll.u32 [#allocation7], 4
      %s346 = int_to_ptr.vmem [resolvable:$true] %s345
      %348 = dma.vmem_to_hbm [thread:$0]  %s346, 64, %s2, [#allocation4]
    $region21: #{tpu_custom_call.1} parent=1 // pred_fallthru
      _
    // Predicated region
    $region22: #{tpu_custom_call.1} parent=1 // pred_check
      _
    $region23: #{tpu_custom_call.1} parent=1 // pred_check_branch
      %350 = sbr.rel (0) target = $region25
    $region24: #{tpu_custom_call.1} parent=1 // pred_region
      %351 = dma.done [#allocation4], 64
    $region25: #{tpu_custom_call.1} parent=1 // pred_fallthru
      _
    %352 = vsyncpa [#allocation3], 1
    %353 = vsyncpa [#allocation6], 1
    %354 = vsyncpa [#allocation4], 1

</llo_original>
